<compile_context>
chip_gen: v5e
topology: v5e:2x2
jax: 0.10.0
libtpu: 0.0.40
codegen_flags: <defaults>
</compile_context>

<pallas_src>
import functools

import jax
import jax.numpy as jnp
from jax.experimental import pallas as pl
from jax.experimental.pallas import tpu as pltpu


def _nce_kernel(probs_ref, out_ref, *, c0, inv_pn, group, num_rows, num_cols):
    """Accumulate sum(t) - sum(log(p0/Pn)) into a resident (8,128) block.

    num_rows / num_cols are static ints when the corresponding grid dimension
    has a ragged last tile (mask needed), otherwise None (no masking code).
    """
    i = pl.program_id(0)          # row tile
    j = pl.program_id(1)          # column tile

    @pl.when((i == 0) & (j == 0))
    def _():
        out_ref[...] = jnp.zeros_like(out_ref)

    p = probs_ref[...].astype(jnp.float32)                 # (tile_b, tile_n)
    tb, tn = p.shape

    # ratio = (p + Pn + eps) / Pn; one VPU add + one VPU mul, no divide.
    r = (p + c0) * inv_pn

    # Mask padded (out-of-bounds) lanes/rows to ratio == 1.0 so they contribute
    # log(1) == 0 and garbage values never reach the log / the product.
    valid = None
    if num_cols is not None:
        cols = jax.lax.broadcasted_iota(jnp.int32, (tb, tn), 1) + j * tn
        valid = cols < num_cols
    if num_rows is not None:
        rows = jax.lax.broadcasted_iota(jnp.int32, (tb, tn), 0) + i * tb
        row_ok = rows < num_rows
        valid = row_ok if valid is None else (valid & row_ok)
    if valid is not None:
        r = jnp.where(valid, r, 1.0)

    # log-of-products: fold `group` lane-aligned 128-wide slices into one log
    # (VPU multiplies are free next to the single EUP slot).
    if group > 1:
        w = tn // group
        prod = r[:, :w]
        for g in range(1, group):
            prod = prod * r[:, g * w:(g + 1) * w]
        t = jnp.log(prod)
    else:
        t = jnp.log(r)

    out_ref[...] += jnp.sum(t)                             # scalar broadcast add

    # Positive-column correction: global column 0 lives only in column tile 0.
    @pl.when(j == 0)
    def _():
        pos = jnp.log(p[:, :1] * inv_pn)                   # (tile_b, 1)
        if num_rows is not None:
            rows0 = jax.lax.broadcasted_iota(jnp.int32, (tb, 1), 0) + i * tb
            pos = jnp.where(rows0 < num_rows, pos, 0.0)
        out_ref[...] -= jnp.sum(pos)


def _round_up(x, m):
    return -(-x // m) * m


def _round_down(x, m):
    return max(m, (x // m) * m)


def nce_criterion(probs, num_images, num_noise=4096, eps=1e-07,
                  target_block_bytes=4 * 1024 * 1024):
    """Pallas implementation of NCECriterion.forward. Returns a scalar f32 loss."""
    B, N = probs.shape
    noise_prob = num_noise * (1.0 / num_images)
    itemsize = probs.dtype.itemsize

    LANE, SUB, GROUP_LANES = 128, 8, 512
    cover128 = _round_up(N, LANE)
    cover512 = _round_up(N, GROUP_LANES)

    # --- tiling ------------------------------------------------------------
    # Blocks target ~4 MiB (roofline sweet spot); double-buffered input then
    # needs ~8 MiB of VMEM, comfortably inside every generation's scoped
    # default (16 MiB v5e / 32 MiB v6e & v7x).
    if B * LANE * itemsize <= target_block_bytes:
        # Full-batch column slabs.
        tile_b = B
        budget_cols = _round_down(target_block_bytes // (B * itemsize), LANE)
        if budget_cols >= cover128:
            # Whole width fits in one tile. Prefer an exact (unmasked) cover;
            # otherwise widen to a 512-aligned tile so 4 ratios share one log.
            if cover128 == cover512 or N % LANE == 0 or budget_cols < cover512:
                tile_n = cover128
            else:
                tile_n = cover512
        else:
            tile_n = (_round_down(budget_cols, GROUP_LANES)
                      if budget_cols >= GROUP_LANES else budget_cols)
    else:
        # Huge batch: keep lanes wide (<=2048) and tile rows instead.
        tile_n = min(cover512, 2048)
        tile_b = _round_down(target_block_bytes // (tile_n * itemsize), SUB)

    n_row_tiles = pl.cdiv(B, tile_b)
    n_col_tiles = pl.cdiv(N, tile_n)
    ragged_rows = (B % tile_b) != 0
    ragged_cols = (N % tile_n) != 0

    # Static log-grouping factor: product of `group` ratios must stay inside
    # f32 range even for generously large inputs.
    group = 1
    max_ratio = (1e4 + noise_prob + eps) / noise_prob
    for g in (4, 2):
        if tile_n % (LANE * g) == 0 and max_ratio ** g < 1e37:
            group = g
            break

    kernel = functools.partial(
        _nce_kernel,
        c0=float(noise_prob + eps),
        inv_pn=float(1.0 / noise_prob),
        group=group,
        num_rows=B if ragged_rows else None,
        num_cols=N if ragged_cols else None,
    )

    cost = pl.CostEstimate(
        flops=3 * B * N,
        transcendentals=B * N // group + B,
        bytes_accessed=B * N * itemsize + 8 * 128 * 4,
    )

    partial = pl.pallas_call(
        kernel,
        out_shape=jax.ShapeDtypeStruct((8, 128), jnp.float32),
        grid_spec=pltpu.PrefetchScalarGridSpec(
            num_scalar_prefetch=0,
            grid=(n_row_tiles, n_col_tiles),
            in_specs=[pl.BlockSpec((tile_b, tile_n), lambda i, j: (i, j))],
            out_specs=pl.BlockSpec((8, 128), lambda i, j: (0, 0)),
        ),
        compiler_params=pltpu.CompilerParams(
            dimension_semantics=("arbitrary", "arbitrary")),
        cost_estimate=cost,
    )(probs)

    # Every element of the output block holds the same accumulated scalar.
    return partial[0, 0] / B


def nce_criterion_ref(probs, num_images, num_noise=4096, eps=1e-07):
    """Pure-JAX reference (mirrors the PyTorch module)."""
    noise_prob = num_noise * (1.0 / num_images)
    batch_size = probs.shape[0]
    pos_probs = probs[:, 0]
    pos_loss = jnp.log(pos_probs / (pos_probs + noise_prob + eps))
    neg_probs = probs[:, 1:]
    neg_loss = jnp.log(noise_prob / (neg_probs + noise_prob + eps))
    return -(jnp.sum(pos_loss) + jnp.sum(neg_loss)) / batch_size


if __name__ == "__main__":
    key = jax.random.PRNGKey(0)
    cases = [
        # lane-aligned columns (exercises the unmasked path)
        dict(batch=8, num_noise=255, num_images=1024),
        # module-default noise count -> 4097 columns (exercises the ragged mask)
        dict(batch=8, num_noise=4096, num_images=8192),
    ]
    for idx, c in enumerate(cases):
        k = jax.random.fold_in(key, idx)
        n_cols = c["num_noise"] + 1
        probs = jax.random.uniform(
            k, (c["batch"], n_cols), dtype=jnp.float32, minval=1e-3, maxval=1.0)

        loss = jax.block_until_ready(
            nce_criterion(probs, num_images=c["num_images"],
                          num_noise=c["num_noise"]))
        ref = nce_criterion_ref(probs, num_images=c["num_images"],
                                num_noise=c["num_noise"])
        assert jnp.allclose(loss, ref, rtol=2e-4, atol=1e-5), (idx, loss, ref)

    print("KERNEL_OK")
</pallas_src>

<mosaic_0001>
module attributes {stable_mosaic.version = 11 : i64} {
  func.func @_nce_kernel(%arg0: i32, %arg1: i32, %arg2: memref<8x256xf32, #tpu.memory_space<vmem>>, %arg3: memref<8x128xf32, #tpu.memory_space<vmem>>) attributes {dimension_semantics = [#tpu.dimension_semantics<arbitrary>, #tpu.dimension_semantics<arbitrary>], iteration_bounds = array<i64: 1, 1>, scalar_prefetch = 0 : i64, scratch_operands = 0 : i64, tpu.core_type = #tpu.core_type<tc>, window_params = [{transform_indices = @transform_0, window_bounds = array<i64: 8, 256>}, {pipeline_mode = #tpu.pipeline_mode<synchronous>, transform_indices = @transform_1, window_bounds = array<i64: 8, 128>}]} {
    %c0_i32 = arith.constant 0 : i32
    %0 = arith.cmpi eq, %arg0, %c0_i32 : i32
    %c0_i32_0 = arith.constant 0 : i32
    %1 = arith.cmpi eq, %arg1, %c0_i32_0 : i32
    %2 = arith.andi %0, %1 : i1
    %3 = arith.extui %2 : i1 to i32
    %c0_i32_1 = arith.constant 0 : i32
    %4 = arith.cmpi ne, %3, %c0_i32_1 : i32
    scf.if %4 {
      %cst_11 = arith.constant 0.000000e+00 : f32
      %25 = vector.broadcast %cst_11 : f32 to vector<8x128xf32>
      %c0_12 = arith.constant 0 : index
      %c0_13 = arith.constant 0 : index
      %26 = vector.load %arg3[%c0_12, %c0_13] : memref<8x128xf32, #tpu.memory_space<vmem>>, vector<8x128xf32>
      tpu.vector_store %arg3[%c0_12, %c0_13], %25 {strides = array<i32>} : memref<8x128xf32, #tpu.memory_space<vmem>>, vector<8x128xf32>,
    } else {
    }
    %c0 = arith.constant 0 : index
    %c0_2 = arith.constant 0 : index
    %5 = vector.load %arg2[%c0, %c0_2] : memref<8x256xf32, #tpu.memory_space<vmem>>, vector<8x256xf32>
    %cst = arith.constant 0.249023542 : f32
    %6 = vector.broadcast %cst : f32 to vector<8x256xf32>
    %7 = arith.addf %5, %6 : vector<8x256xf32>
    %cst_3 = arith.constant 4.01568651 : f32
    %8 = vector.broadcast %cst_3 : f32 to vector<8x256xf32>
    %9 = arith.mulf %7, %8 : vector<8x256xf32>
    %10 = vector.extract_strided_slice %9 {offsets = [0, 0], sizes = [8, 128], strides = [1, 1]} : vector<8x256xf32> to vector<8x128xf32>
    %11 = vector.extract_strided_slice %9 {offsets = [0, 128], sizes = [8, 128], strides = [1, 1]} : vector<8x256xf32> to vector<8x128xf32>
    %12 = arith.mulf %10, %11 : vector<8x128xf32>
    %13 = math.log %12 : vector<8x128xf32>
    %c0_4 = arith.constant 0 : index
    %c0_5 = arith.constant 0 : index
    %14 = vector.load %arg3[%c0_4, %c0_5] : memref<8x128xf32, #tpu.memory_space<vmem>>, vector<8x128xf32>
    %15 = vector.shape_cast %13 : vector<8x128xf32> to vector<1x8x128xf32>
    %cst_6 = arith.constant dense<0.000000e+00> : vector<1xf32>
    %16 = vector.multi_reduction <add>, %15, %cst_6 [1, 2] : vector<1x8x128xf32> to vector<1xf32>
    %17 = vector.shape_cast %16 : vector<1xf32> to vector<1x1x1xf32>
    %18 = vector.extract %17[0, 0, 0] : f32 from vector<1x1x1xf32>
    %19 = vector.broadcast %18 : f32 to vector<8x128xf32>
    %20 = arith.addf %14, %19 : vector<8x128xf32>
    %c0_7 = arith.constant 0 : index
    %c0_8 = arith.constant 0 : index
    %21 = vector.load %arg3[%c0_7, %c0_8] : memref<8x128xf32, #tpu.memory_space<vmem>>, vector<8x128xf32>
    tpu.vector_store %arg3[%c0_7, %c0_8], %20 {strides = array<i32>} : memref<8x128xf32, #tpu.memory_space<vmem>>, vector<8x128xf32>,
    %c0_i32_9 = arith.constant 0 : i32
    %22 = arith.cmpi eq, %arg1, %c0_i32_9 : i32
    %23 = arith.extui %22 : i1 to i32
    %c0_i32_10 = arith.constant 0 : i32
    %24 = arith.cmpi ne, %23, %c0_i32_10 : i32
    scf.if %24 {
      %25 = vector.extract_strided_slice %5 {offsets = [0, 0], sizes = [8, 1], strides = [1, 1]} : vector<8x256xf32> to vector<8x1xf32>
      %cst_11 = arith.constant 4.01568651 : f32
      %26 = vector.broadcast %cst_11 : f32 to vector<8x1xf32>
      %27 = arith.mulf %25, %26 : vector<8x1xf32>
      %28 = math.log %27 : vector<8x1xf32>
      %c0_12 = arith.constant 0 : index
      %c0_13 = arith.constant 0 : index
      %29 = vector.load %arg3[%c0_12, %c0_13] : memref<8x128xf32, #tpu.memory_space<vmem>>, vector<8x128xf32>
      %30 = vector.shape_cast %28 : vector<8x1xf32> to vector<1x8x1xf32>
      %cst_14 = arith.constant dense<0.000000e+00> : vector<1xf32>
      %31 = vector.multi_reduction <add>, %30, %cst_14 [1, 2] : vector<1x8x1xf32> to vector<1xf32>
      %32 = vector.shape_cast %31 : vector<1xf32> to vector<1x1x1xf32>
      %33 = vector.extract %32[0, 0, 0] : f32 from vector<1x1x1xf32>
      %34 = vector.broadcast %33 : f32 to vector<8x128xf32>
      %35 = arith.subf %29, %34 : vector<8x128xf32>
      %c0_15 = arith.constant 0 : index
      %c0_16 = arith.constant 0 : index
      %36 = vector.load %arg3[%c0_15, %c0_16] : memref<8x128xf32, #tpu.memory_space<vmem>>, vector<8x128xf32>
      tpu.vector_store %arg3[%c0_15, %c0_16], %35 {strides = array<i32>} : memref<8x128xf32, #tpu.memory_space<vmem>>, vector<8x128xf32>,
    } else {
    }
    return
  }
  func.func @transform_0(%arg0: i32, %arg1: i32) -> (i32, i32) {
    %c0_i32 = arith.constant 0 : i32
    return %arg0, %arg1 : i32, i32
  }
  func.func @transform_1(%arg0: i32, %arg1: i32) -> (i32, i32) {
    %c0_i32 = arith.constant 0 : i32
    %c0_i32_0 = arith.constant 0 : i32
    %c0_i32_1 = arith.constant 0 : i32
    return %c0_i32, %c0_i32_0 : i32, i32
  }
}

</mosaic_0001>

<llo_original>
// kernel: tpu_custom_call.1
$region0: #{tpu_custom_call.1}
  #allocation0 [shape = 'u32[]', space=smem, size = 0x4, offset = 0x4, fixed_abs, tag = 'smem constant byte address 0x4 - core index']
  #allocation1 [shape = 'u32[72,128]{1,0:T(1,128)}', space=vmem, size = 0x9000, scoped, tag = 'internal scratch']
  %s0 = inlined_call_operand.hbm [shape: f32[8,256], index: 0, kind: input, shape index: {}]
  %s1 = inlined_call_operand.hbm [shape: f32[8,128], index: 1, kind: output, shape index: {}]
  %s2 = sld [smem:[#allocation0]]
  $region26: #{tpu_custom_call.1} parent=0
    _
  %s4 = ssub.s32 1, %s2
  %s5 = scalar_select 0, %s4, %s2
  $region1: #{tpu_custom_call.1} parent=0
    #allocation2 [shape = 'u8[8192]{0}', space=vmem, size = 0x2000, scoped, tag = 'input window, operand 0, single buffered']
    #allocation3 [shape = 's32[1]{0}', space=sflag, size = 0x4, scoped, tag = 'scoped memory for tpu_custom_call.1']
    #allocation4 [shape = 's32[1]{0}', space=sflag, size = 0x4, scoped, tag = 'scoped memory for tpu_custom_call.1']
    #allocation5 [shape = 'u8[4096]{0}', space=vmem, size = 0x1000, scoped, tag = 'output window, operand 0, single buffered']
    %6 = vsyncpa [#allocation3], 0
    %7 = vsyncpa [#allocation4], 0
    // Predicated region
    $region2: #{tpu_custom_call.1} parent=1 // pred_check
      _
    $region3: #{tpu_custom_call.1} parent=1 // pred_check_branch
      %9 = sbr.rel (0) target = $region5
    $region4: #{tpu_custom_call.1} parent=1 // pred_region
      %11 = vsyncadd [#allocation3], 0
      %s13 = sshll.u32 %s0, 4
      %s14 = int_to_ptr.hbm [resolvable:$true] %s13
      %s15 = sshll.u32 [#allocation2], 4
      %s16 = int_to_ptr.vmem [resolvable:$true] %s15
      %18 = dma.hbm_to_vmem [thread:$0]  %s14, 256, %s16, [#allocation3]
    $region5: #{tpu_custom_call.1} parent=1 // pred_fallthru
      _
    // Predicated region
    $region6: #{tpu_custom_call.1} parent=1 // pred_check
      _
    $region7: #{tpu_custom_call.1} parent=1 // pred_check_branch
      %20 = sbr.rel (0) target = $region9
    $region8: #{tpu_custom_call.1} parent=1 // pred_region
      %22 = dma.done [#allocation3], 256
    $region9: #{tpu_custom_call.1} parent=1 // pred_fallthru
      _
    %p23 = scmp.eq.s32.totalorder 0, 0
    %p24 = scmp.eq.s32.totalorder 0, 0
    %p25 = pnand %p23, %p24
    %p26 = pneg %p25
    // Predicated region
    $region10: #{tpu_custom_call.1} parent=1 // pred_check
      _
    $region11: #{tpu_custom_call.1} parent=1 // pred_check_branch
      %28 = sbr.rel (%p25) target = $region13
    $region12: #{tpu_custom_call.1} parent=1 // pred_region
      %29 = vst [vmem:[#allocation5] sm:$0xff] 0.0
    $region13: #{tpu_custom_call.1} parent=1 // pred_fallthru
      _
    %v30 = vld [vmem:[#allocation2] sm:$0xff]
    %v31 = vld [vmem:[#allocation2 + $0x8] sm:$0xff]
    %v32 = vadd.f32 %v30, 0.24902354
    %v33 = vadd.f32 %v31, 0.24902354
    %v34 = vmul.f32 %v32, 4.0156865
    %v35 = vmul.f32 %v33, 4.0156865
    %v36 = vmul.f32 %v34, %v35
    %v37 = vlog2.pop %v36
    %v38 = vmul.f32 %v37, 0.6931472
    %v39 = vld [vmem:[#allocation5] sm:$0xff]
    %40 = vadd.xlane.f32.xlu0 %v38
    %v41 = vpop.xlane.xlu0 %40
    %v42 = vrot.slane %v41, 4
    %v43 = vadd.f32 %v41, %v42
    %v44 = vrot.slane %v43, 2
    %v45 = vadd.f32 %v43, %v44
    %v46 = vrot.slane %v45, 1
    %v47 = vadd.f32 %v45, %v46
    %s48 = vtos %v47
    %v49 = vstv %s48
    %v50 = vadd.f32 %v39, %v49
    %51 = vst [vmem:[#allocation5] sm:$0xff] %v50
    // Predicated region
    $region14: #{tpu_custom_call.1} parent=1 // pred_check
      %p52 = pneg %p24
    $region15: #{tpu_custom_call.1} parent=1 // pred_check_branch
      %54 = sbr.rel (%p52) target = $region17
    $region16: #{tpu_custom_call.1} parent=1 // pred_region
      %v55 = vmul.f32 %v30, 4.0156865
      %v56 = vlog2.pop %v55
      %v57 = vmul.f32 %v56, 0.6931472
      %v58 = vld [vmem:[#allocation5] sm:$0xff]
      %vm59 = vcmask 7168
      %v60 = vsel %vm59, %v57, 0.0
      %61 = vadd.xlane.f32.xlu0 %v60
      %v62 = vpop.xlane.xlu0 %61
      %v63 = vrot.slane %v62, 4
      %v64 = vadd.f32 %v62, %v63
      %v65 = vrot.slane %v64, 2
      %v66 = vadd.f32 %v64, %v65
      %v67 = vrot.slane %v66, 1
      %v68 = vadd.f32 %v66, %v67
      %s69 = vtos %v68
      %v70 = vstv %s69
      %v71 = vsub.f32 %v58, %v70
      %72 = vst [vmem:[#allocation5] sm:$0xff] %v71
    $region17: #{tpu_custom_call.1} parent=1 // pred_fallthru
      _
    // Predicated region
    $region18: #{tpu_custom_call.1} parent=1 // pred_check
      _
    $region19: #{tpu_custom_call.1} parent=1 // pred_check_branch
      %74 = sbr.rel (0) target = $region21
    $region20: #{tpu_custom_call.1} parent=1 // pred_region
      %76 = vsyncadd [#allocation4], 0
      %s78 = sshll.u32 [#allocation5], 4
      %s79 = int_to_ptr.vmem [resolvable:$true] %s78
      %s80 = sshll.u32 %s1, 4
      %s81 = int_to_ptr.hbm [resolvable:$true] %s80
      %83 = dma.vmem_to_hbm [thread:$0]  %s79, 128, %s81, [#allocation4]
    $region21: #{tpu_custom_call.1} parent=1 // pred_fallthru
      _
    // Predicated region
    $region22: #{tpu_custom_call.1} parent=1 // pred_check
      _
    $region23: #{tpu_custom_call.1} parent=1 // pred_check_branch
      %85 = sbr.rel (0) target = $region25
    $region24: #{tpu_custom_call.1} parent=1 // pred_region
      %87 = dma.done [#allocation4], 128
    $region25: #{tpu_custom_call.1} parent=1 // pred_fallthru
      _
    %88 = vsyncpa [#allocation3], 1
    %89 = vsyncpa [#allocation4], 1

</llo_original>
